<compile_context>
chip_gen: v7x
topology: tpu7x:2x2x1
jax: 0.10.0
libtpu: 0.0.40
codegen_flags: <defaults>
</compile_context>

<pallas_src>
import functools
import math

import jax
import jax.numpy as jnp
from jax.experimental import pallas as pl
from jax.experimental.pallas import tpu as pltpu


def _round_up(n, m):
    return ((n + m - 1) // m) * m


def _pad_dims(D, N, compute_dtype):
    """Static padding / tile plan for the fused matmul (shared by pack + forward)."""
    itemsize = jnp.dtype(compute_dtype).itemsize
    tk_cap = 2048 if itemsize <= 2 else 1024      # big K tiles -> ~MiB weight DMAs
    D_pad = _round_up(D, 128)
    TK = D_pad if D_pad <= tk_cap else tk_cap
    D_pad = _round_up(D_pad, TK)
    N_pad = _round_up(N, 128)
    TN = N_pad if N_pad <= 512 else 512
    N_pad = _round_up(N_pad, TN)
    return D_pad, N_pad, TK, TN


def pack_tree_weights(w_root, b_root, w_sons, b_sons, *,
                      compute_dtype=jnp.bfloat16):
    """Pre-pack [gating | expert_0 | ... | expert_{S-1}] ONCE at init time.

    Keeps the concatenate / transpose / pad / dtype-cast out of the per-call
    forward path (it used to be re-materialized in HBM on every call).
    """
    D, S = w_root.shape
    C = w_sons.shape[2]
    N = S + S * C
    D_pad, N_pad, _, _ = _pad_dims(D, N, compute_dtype)
    w_all = jnp.concatenate(
        [w_root, jnp.transpose(w_sons, (1, 0, 2)).reshape(D, S * C)], axis=1)
    b_all = jnp.concatenate([b_root, b_sons.reshape(S * C)]).reshape(1, N)
    # TODO(synk): on v7x, optionally store the packed weights as fp8 (e4m3) with
    # per-column scales folded into the bias epilogue for another ~2x HBM saving.
    w_p = jnp.pad(w_all, ((0, D_pad - D), (0, N_pad - N))).astype(compute_dtype)
    b_p = jnp.pad(b_all, ((0, 0), (0, N_pad - N))).astype(jnp.float32)
    return w_p, b_p


# ----------------------------------------------------------------------------
# Fused gating + all-experts matmul:
#   Y = x_flat @ [w_root | w_son_0 | ... | w_son_{S-1}] + b
# grid = (M tiles, N tiles, K tiles); reduction axis (K over D) is last.
# The f32 output block is the accumulator (its block index ignores k, so it
# stays VMEM-resident across the whole reduction) and is initialized with the
# broadcast bias at k == 0 — no separate VMEM scratch, no epilogue copy.
# ----------------------------------------------------------------------------
def fused_matmul_kernel(x_ref, w_ref, b_ref, o_ref):
    @pl.when(pl.program_id(2) == 0)
    def _():
        o_ref[...] = jnp.broadcast_to(b_ref[...], o_ref.shape)

    o_ref[...] += jnp.dot(x_ref[...], w_ref[...],
                          preferred_element_type=jnp.float32)


@functools.partial(jax.jit, static_argnames=("num_sons", "num_classes", "top_k"))
def tree_module_forward(x, w_packed, b_packed, *, num_sons, num_classes, top_k):
    B = x.shape[0]
    D = math.prod(x.shape[1:])
    S, C = num_sons, num_classes
    N = S + S * C
    compute_dtype = w_packed.dtype
    itemsize = jnp.dtype(compute_dtype).itemsize

    D_pad, N_pad, TK, TN = _pad_dims(D, N, compute_dtype)
    if w_packed.shape != (D_pad, N_pad) or b_packed.shape != (1, N_pad):
        raise ValueError("w_packed/b_packed were packed with different "
                         "shapes/dtype than this forward expects.")

    # Batch tiling: sublane granularity follows the packed layout of the
    # compute dtype (8 f32 / 16 bf16 / 32 for 8-bit).  TM cap 256 matches the
    # v6e/v7x 256-wide MXU (keep <=128 on v5e for very large B).
    sub = max(8, 32 // itemsize)
    B_pad = _round_up(B, sub)
    TM = B_pad if B_pad <= 256 else 256
    B_pad = _round_up(B_pad, TM)

    xf = x.reshape(B, D)
    xf_p = jnp.pad(xf, ((0, B_pad - B), (0, D_pad - D))).astype(compute_dtype)

    grid = (B_pad // TM, N_pad // TN, D_pad // TK)
    # TODO(synk): on v7x (2 TensorCores) with tiny B and a single N tile the
    # grid has no parallel axis >= 2; splitting N_pad across >=2 j-tiles would
    # let the second core share the weight stream.

    # Double-buffered footprint (+ headroom) so larger TK/TM tiles never hit
    # the default scoped-VMEM ceiling; CostEstimate helps XLA schedule the
    # routing glue around the kernel.
    gi, gj = grid[0], grid[1]
    vmem_bytes = 2 * (TM * TK + TK * TN + TN) * itemsize + 2 * TM * TN * 4
    vmem_limit = min(64 * 1024 * 1024, max(32 * 1024 * 1024, 2 * vmem_bytes))
    cost = pl.CostEstimate(
        flops=2 * B_pad * D_pad * N_pad,
        transcendentals=0,
        bytes_accessed=int(B_pad * D_pad * itemsize * gj
                           + D_pad * N_pad * itemsize * gi
                           + B_pad * N_pad * 4 + N_pad * 4 * gi),
    )

    y = pl.pallas_call(
        fused_matmul_kernel,
        out_shape=jax.ShapeDtypeStruct((B_pad, N_pad), jnp.float32),
        grid=grid,
        in_specs=[
            pl.BlockSpec((TM, TK), lambda i, j, k: (i, k)),
            pl.BlockSpec((TK, TN), lambda i, j, k: (k, j)),
            pl.BlockSpec((1, TN), lambda i, j, k: (0, j)),
        ],
        out_specs=pl.BlockSpec((TM, TN), lambda i, j, k: (i, j)),
        compiler_params=pltpu.CompilerParams(
            dimension_semantics=("parallel", "parallel", "arbitrary"),
            vmem_limit_bytes=int(vmem_limit)),
        cost_estimate=cost,
    )(xf_p, w_packed, b_packed)

    # ---- top-k + softmax routing glue (matches torch.topk / F.softmax) ------
    # TODO(synk): top-k is data-dependent sorting with no clean Pallas TPU
    # primitive; kept as jax.lax.top_k / jax.nn.softmax.  If S grows beyond a
    # handful, switch kernel 1 to a PrefetchScalarGridSpec that DMAs only the
    # K selected experts' weight columns instead of dense all-experts eval.
    choose = y[:B, :S]
    vals, idx = jax.lax.top_k(choose, top_k)           # sorted desc, like torch
    sm = jax.nn.softmax(vals, axis=1)                  # (B, K)
    gate = jnp.zeros((B, S), jnp.float32).at[
        jnp.arange(B)[:, None], idx].set(sm)           # dense (B, S) gates

    # Weighted combine == torch.bmm(smoothed.unsqueeze(1), son_logits):
    # non-selected experts carry gate == 0 and top-k indices are distinct.
    experts = y[:B, S:S + S * C].reshape(B, S, C)
    out = jnp.einsum("bs,bsc->bc", gate, experts)
    return out[:, None, :]                             # (B, 1, C)


# ----------------------------------------------------------------------------
# Pure-JAX reference (dtype-parameterized: operands rounded to compute_dtype,
# accumulation in f32 — mirrors the kernel's numerics without any Pallas).
# ----------------------------------------------------------------------------
def reference_forward(x, w_root, b_root, w_sons, b_sons, top_k,
                      compute_dtype=jnp.float32):
    B = x.shape[0]
    cast = lambda a: a.astype(compute_dtype).astype(jnp.float32)
    xf = cast(x.reshape(B, -1))
    choose = xf @ cast(w_root) + b_root
    vals, idx = jax.lax.top_k(choose, top_k)
    sm = jax.nn.softmax(vals, axis=1)
    son_logits = jnp.einsum("bd,bkdc->bkc", xf, cast(w_sons)[idx]) + b_sons[idx]
    return jnp.einsum("bk,bkc->bc", sm, son_logits)[:, None, :]


if __name__ == "__main__":
    # Small, deterministic shapes: batch=2, channels=4, spatial=16x16,
    # num_sons=4, top_k=2, num_classes=16.
    B, Cin, H, W = 2, 4, 16, 16
    D = Cin * H * W               # 1024
    S = 4                         # number of son experts
    K = 2                         # top_k
    C = 16                        # classes per son

    key = jax.random.PRNGKey(0)
    kx, kr, kbr, ks, kbs = jax.random.split(key, 5)

    x = jax.random.normal(kx, (B, Cin, H, W), dtype=jnp.float32)
    w_root = jax.random.normal(kr, (D, S), dtype=jnp.float32) * 0.02
    b_root = jax.random.normal(kbr, (S,), dtype=jnp.float32) * 0.02
    w_sons = jax.random.normal(ks, (S, D, C), dtype=jnp.float32) * 0.02
    b_sons = jax.random.normal(kbs, (S, C), dtype=jnp.float32) * 0.02

    # ---- f32 path: exact check vs. the torch-float32 reference -------------
    w_p32, b_p32 = pack_tree_weights(w_root, b_root, w_sons, b_sons,
                                     compute_dtype=jnp.float32)
    out32 = tree_module_forward(x, w_p32, b_p32,
                                num_sons=S, num_classes=C, top_k=K)
    out32 = jax.block_until_ready(out32)
    ref32 = reference_forward(x, w_root, b_root, w_sons, b_sons, K)
    assert out32.shape == (B, 1, C), out32.shape
    assert jnp.allclose(out32, ref32, atol=1e-4, rtol=1e-4), (
        f"f32 mismatch: max abs diff {jnp.max(jnp.abs(out32 - ref32))}")

    # ---- bf16 default path: looser tolerance vs. bf16-rounded reference ----
    w_pbf, b_pbf = pack_tree_weights(w_root, b_root, w_sons, b_sons)
    outbf = tree_module_forward(x, w_pbf, b_pbf,
                                num_sons=S, num_classes=C, top_k=K)
    outbf = jax.block_until_ready(outbf)
    refbf = reference_forward(x, w_root, b_root, w_sons, b_sons, K,
                              compute_dtype=jnp.bfloat16)
    assert outbf.shape == (B, 1, C), outbf.shape
    assert jnp.allclose(outbf, refbf, atol=2e-2, rtol=2e-2), (
        f"bf16 mismatch: max abs diff {jnp.max(jnp.abs(outbf - refbf))}")

    print("KERNEL_OK")
</pallas_src>

<mosaic_0001>
module attributes {stable_mosaic.version = 11 : i64} {
  func.func @fused_matmul_kernel(%arg0: i32, %arg1: i32, %arg2: i32, %arg3: memref<8x1024xf32, #tpu.memory_space<vmem>>, %arg4: memref<1024x128xf32, #tpu.memory_space<vmem>>, %arg5: memref<1x128xf32, #tpu.memory_space<vmem>>, %arg6: memref<8x128xf32, #tpu.memory_space<vmem>>) attributes {dimension_semantics = [#tpu.dimension_semantics<parallel>, #tpu.dimension_semantics<parallel>, #tpu.dimension_semantics<arbitrary>], iteration_bounds = array<i64: 1, 1, 1>, scalar_prefetch = 0 : i64, scratch_operands = 0 : i64, tpu.core_type = #tpu.core_type<tc>, window_params = [{transform_indices = @transform_0, window_bounds = array<i64: 8, 1024>}, {transform_indices = @transform_1, window_bounds = array<i64: 1024, 128>}, {transform_indices = @transform_2, window_bounds = array<i64: 1, 128>}, {transform_indices = @transform_3, window_bounds = array<i64: 8, 128>}]} {
    %c0_i32 = arith.constant 0 : i32
    %0 = arith.cmpi eq, %arg2, %c0_i32 : i32
    %1 = arith.extui %0 : i1 to i32
    %c0_i32_0 = arith.constant 0 : i32
    %2 = arith.cmpi ne, %1, %c0_i32_0 : i32
    scf.if %2 {
      %c0_8 = arith.constant 0 : index
      %c0_9 = arith.constant 0 : index
      %9 = vector.load %arg5[%c0_8, %c0_9] : memref<1x128xf32, #tpu.memory_space<vmem>>, vector<1x128xf32>
      %10 = vector.shape_cast %9 : vector<1x128xf32> to vector<1x128xf32>
      %11 = vector.broadcast %10 : vector<1x128xf32> to vector<8x128xf32>
      %c0_10 = arith.constant 0 : index
      %c0_11 = arith.constant 0 : index
      %12 = vector.load %arg6[%c0_10, %c0_11] : memref<8x128xf32, #tpu.memory_space<vmem>>, vector<8x128xf32>
      tpu.vector_store %arg6[%c0_10, %c0_11], %11 {strides = array<i32>} : memref<8x128xf32, #tpu.memory_space<vmem>>, vector<8x128xf32>,
    } else {
    }
    %c0 = arith.constant 0 : index
    %c0_1 = arith.constant 0 : index
    %3 = vector.load %arg6[%c0, %c0_1] : memref<8x128xf32, #tpu.memory_space<vmem>>, vector<8x128xf32>
    %c0_2 = arith.constant 0 : index
    %c0_3 = arith.constant 0 : index
    %4 = vector.load %arg3[%c0_2, %c0_3] : memref<8x1024xf32, #tpu.memory_space<vmem>>, vector<8x1024xf32>
    %c0_4 = arith.constant 0 : index
    %c0_5 = arith.constant 0 : index
    %5 = vector.load %arg4[%c0_4, %c0_5] : memref<1024x128xf32, #tpu.memory_space<vmem>>, vector<1024x128xf32>
    %cst = arith.constant dense<0.000000e+00> : vector<8x128xf32>
    %6 = tpu.matmul %4, %5, %cst {dimension_numbers = #tpu.dot_dimension_numbers<[1], [0], [0], [1], [0, 0, 1, 1], [], []>} : vector<8x1024xf32>, vector<1024x128xf32>, vector<8x128xf32> -> vector<8x128xf32>
    %7 = arith.addf %3, %6 : vector<8x128xf32>
    %c0_6 = arith.constant 0 : index
    %c0_7 = arith.constant 0 : index
    %8 = vector.load %arg6[%c0_6, %c0_7] : memref<8x128xf32, #tpu.memory_space<vmem>>, vector<8x128xf32>
    tpu.vector_store %arg6[%c0_6, %c0_7], %7 {strides = array<i32>} : memref<8x128xf32, #tpu.memory_space<vmem>>, vector<8x128xf32>,
    return
  }
  func.func @transform_0(%arg0: i32, %arg1: i32, %arg2: i32) -> (i32, i32) {
    %c0_i32 = arith.constant 0 : i32
    return %arg0, %arg2 : i32, i32
  }
  func.func @transform_1(%arg0: i32, %arg1: i32, %arg2: i32) -> (i32, i32) {
    %c0_i32 = arith.constant 0 : i32
    return %arg2, %arg1 : i32, i32
  }
  func.func @transform_2(%arg0: i32, %arg1: i32, %arg2: i32) -> (i32, i32) {
    %c0_i32 = arith.constant 0 : i32
    %c0_i32_0 = arith.constant 0 : i32
    return %c0_i32, %arg1 : i32, i32
  }
  func.func @transform_3(%arg0: i32, %arg1: i32, %arg2: i32) -> (i32, i32) {
    %c0_i32 = arith.constant 0 : i32
    return %arg0, %arg1 : i32, i32
  }
}

</mosaic_0001>

<llo_original>
// kernel: tree_module_forward.1
$region0: #{tree_module_forward.1}
  #allocation0 [shape = 'u32[]', space=smem, size = 0x4, offset = 0x4, fixed_abs, tag = 'smem constant byte address 0x4 - core index']
  #allocation1 [shape = 'u32[144,128]{1,0:T(1,128)}', space=vmem, size = 0x12000, scoped, tag = 'internal scratch']
  %s0 = inlined_call_operand.vmem [shape: f32[8,1024], index: 0, kind: input, shape index: {}]
  %s1 = inlined_call_operand.hbm [shape: f32[1024,128], index: 1, kind: input, shape index: {}]
  %s2 = inlined_call_operand.vmem [shape: f32[1,128], index: 2, kind: input, shape index: {}]
  %s3 = inlined_call_operand.vmem [shape: f32[8,128], index: 3, kind: output, shape index: {}]
  %s4 = sld [smem:[#allocation0]]
  $region30: #{tree_module_forward.1} parent=0
    _
  %s6 = ssub.s32 1, %s4
  %s7 = scalar_select 0, %s6, %s4
  $region1: #{tree_module_forward.1} parent=0
    #allocation2 [shape = 'u8[524288]{0}', space=vmem, size = 0x80000, scoped, tag = 'input window, operand 1, single buffered']
    #allocation3 [shape = 's32[1]{0}', space=sflag, size = 0x4, scoped, tag = 'scoped memory for tree_module_forward.1']
    %8 = vsyncpa [#allocation3], 0
    // Predicated region
    $region2: #{tree_module_forward.1} parent=1 // pred_check
      _
    $region3: #{tree_module_forward.1} parent=1 // pred_check_branch
      %10 = sbr.rel (0) target = $region5
    $region4: #{tree_module_forward.1} parent=1 // pred_region
      _
    $region5: #{tree_module_forward.1} parent=1 // pred_fallthru
      _
    // Predicated region
    $region6: #{tree_module_forward.1} parent=1 // pred_check
      _
    $region7: #{tree_module_forward.1} parent=1 // pred_check_branch
      %12 = sbr.rel (0) target = $region9
    $region8: #{tree_module_forward.1} parent=1 // pred_region
      %s14 = ssub.s32 16384, 16384
      %15 = vsyncadd [#allocation3], %s14
      %s16 = sshll.u32 [#allocation2], 4
      %s17 = int_to_ptr.vmem [resolvable:$true] %s16
      %22 = dma.hbm_to_vmem [thread:$0]  %s1, 16384, %s17, [#allocation3], 128, 128, 8
    $region9: #{tree_module_forward.1} parent=1 // pred_fallthru
      _
    // Predicated region
    $region10: #{tree_module_forward.1} parent=1 // pred_check
      _
    $region11: #{tree_module_forward.1} parent=1 // pred_check_branch
      %24 = sbr.rel (0) target = $region13
    $region12: #{tree_module_forward.1} parent=1 // pred_region
      _
    $region13: #{tree_module_forward.1} parent=1 // pred_fallthru
      _
    // Predicated region
    $region14: #{tree_module_forward.1} parent=1 // pred_check
      _
    $region15: #{tree_module_forward.1} parent=1 // pred_check_branch
      %26 = sbr.rel (0) target = $region17
    $region16: #{tree_module_forward.1} parent=1 // pred_region
      %27 = dma.done [#allocation3], 16384
    $region17: #{tree_module_forward.1} parent=1 // pred_fallthru
      _
    %p28 = scmp.eq.s32.totalorder 0, 0
    // Predicated region
    $region18: #{tree_module_forward.1} parent=1 // pred_check
      %p29 = pneg %p28
    $region19: #{tree_module_forward.1} parent=1 // pred_check_branch
      %31 = sbr.rel (%p29) target = $region21
    $region20: #{tree_module_forward.1} parent=1 // pred_region
      %v32 = vld [vmem:[%s2] sm:$0x1]
      %v34 = vlaneseq
      %v35 = vshrl.u32 %v34, 7
      %v36 = vsub.s32 0, %v35
      %v37 = vrot.slane %v32, %v36
      %39 = vst [vmem:[%s3] sm:$0xff] %v37
    $region21: #{tree_module_forward.1} parent=1 // pred_fallthru
      _
    %v40 = vld [vmem:[%s3] sm:$0xff]
    %v41 = vld [vmem:[%s0] sm:$0xff]
    %v42 = vld [vmem:[%s0 + $0x8] sm:$0xff]
    %v43 = vld [vmem:[%s0 + $0x10] sm:$0xff]
    %v44 = vld [vmem:[%s0 + $0x18] sm:$0xff]
    %v45 = vld [vmem:[%s0 + $0x20] sm:$0xff]
    %v46 = vld [vmem:[%s0 + $0x28] sm:$0xff]
    %v47 = vld [vmem:[%s0 + $0x30] sm:$0xff]
    %v48 = vld [vmem:[%s0 + $0x38] sm:$0xff]
    %v49 = vld [vmem:[#allocation2] sm:$0xff]
    %v50 = vld [vmem:[#allocation2 + $0x8] sm:$0xff]
    %v51 = vld [vmem:[#allocation2 + $0x10] sm:$0xff]
    %v52 = vld [vmem:[#allocation2 + $0x18] sm:$0xff]
    %v53 = vld [vmem:[#allocation2 + $0x20] sm:$0xff]
    %v54 = vld [vmem:[#allocation2 + $0x28] sm:$0xff]
    %v55 = vld [vmem:[#allocation2 + $0x30] sm:$0xff]
    %v56 = vld [vmem:[#allocation2 + $0x38] sm:$0xff]
    %v57 = vld [vmem:[#allocation2 + $0x40] sm:$0xff]
    %v58 = vld [vmem:[#allocation2 + $0x48] sm:$0xff]
    %v59 = vld [vmem:[#allocation2 + $0x50] sm:$0xff]
    %v60 = vld [vmem:[#allocation2 + $0x58] sm:$0xff]
    %v61 = vld [vmem:[#allocation2 + $0x60] sm:$0xff]
    %v62 = vld [vmem:[#allocation2 + $0x68] sm:$0xff]
    %v63 = vld [vmem:[#allocation2 + $0x70] sm:$0xff]
    %v64 = vld [vmem:[#allocation2 + $0x78] sm:$0xff]
    %v65 = vld [vmem:[#allocation2 + $0x80] sm:$0xff]
    %v66 = vld [vmem:[#allocation2 + $0x88] sm:$0xff]
    %v67 = vld [vmem:[#allocation2 + $0x90] sm:$0xff]
    %v68 = vld [vmem:[#allocation2 + $0x98] sm:$0xff]
    %v69 = vld [vmem:[#allocation2 + $0xa0] sm:$0xff]
    %v70 = vld [vmem:[#allocation2 + $0xa8] sm:$0xff]
    %v71 = vld [vmem:[#allocation2 + $0xb0] sm:$0xff]
    %v72 = vld [vmem:[#allocation2 + $0xb8] sm:$0xff]
    %v73 = vld [vmem:[#allocation2 + $0xc0] sm:$0xff]
    %v74 = vld [vmem:[#allocation2 + $0xc8] sm:$0xff]
    %v75 = vld [vmem:[#allocation2 + $0xd0] sm:$0xff]
    %v76 = vld [vmem:[#allocation2 + $0xd8] sm:$0xff]
    %v77 = vld [vmem:[#allocation2 + $0xe0] sm:$0xff]
    %v78 = vld [vmem:[#allocation2 + $0xe8] sm:$0xff]
    %v79 = vld [vmem:[#allocation2 + $0xf0] sm:$0xff]
    %v80 = vld [vmem:[#allocation2 + $0xf8] sm:$0xff]
    %v81 = vld [vmem:[#allocation2 + $0x100] sm:$0xff]
    %v82 = vld [vmem:[#allocation2 + $0x108] sm:$0xff]
    %v83 = vld [vmem:[#allocation2 + $0x110] sm:$0xff]
    %v84 = vld [vmem:[#allocation2 + $0x118] sm:$0xff]
    %v85 = vld [vmem:[#allocation2 + $0x120] sm:$0xff]
    %v86 = vld [vmem:[#allocation2 + $0x128] sm:$0xff]
    %v87 = vld [vmem:[#allocation2 + $0x130] sm:$0xff]
    %v88 = vld [vmem:[#allocation2 + $0x138] sm:$0xff]
    %v89 = vld [vmem:[#allocation2 + $0x140] sm:$0xff]
    %v90 = vld [vmem:[#allocation2 + $0x148] sm:$0xff]
    %v91 = vld [vmem:[#allocation2 + $0x150] sm:$0xff]
    %v92 = vld [vmem:[#allocation2 + $0x158] sm:$0xff]
    %v93 = vld [vmem:[#allocation2 + $0x160] sm:$0xff]
    %v94 = vld [vmem:[#allocation2 + $0x168] sm:$0xff]
    %v95 = vld [vmem:[#allocation2 + $0x170] sm:$0xff]
    %v96 = vld [vmem:[#allocation2 + $0x178] sm:$0xff]
    %v97 = vld [vmem:[#allocation2 + $0x180] sm:$0xff]
    %v98 = vld [vmem:[#allocation2 + $0x188] sm:$0xff]
    %v99 = vld [vmem:[#allocation2 + $0x190] sm:$0xff]
    %v100 = vld [vmem:[#allocation2 + $0x198] sm:$0xff]
    %v101 = vld [vmem:[#allocation2 + $0x1a0] sm:$0xff]
    %v102 = vld [vmem:[#allocation2 + $0x1a8] sm:$0xff]
    %v103 = vld [vmem:[#allocation2 + $0x1b0] sm:$0xff]
    %v104 = vld [vmem:[#allocation2 + $0x1b8] sm:$0xff]
    %v105 = vld [vmem:[#allocation2 + $0x1c0] sm:$0xff]
    %v106 = vld [vmem:[#allocation2 + $0x1c8] sm:$0xff]
    %v107 = vld [vmem:[#allocation2 + $0x1d0] sm:$0xff]
    %v108 = vld [vmem:[#allocation2 + $0x1d8] sm:$0xff]
    %v109 = vld [vmem:[#allocation2 + $0x1e0] sm:$0xff]
    %v110 = vld [vmem:[#allocation2 + $0x1e8] sm:$0xff]
    %v111 = vld [vmem:[#allocation2 + $0x1f0] sm:$0xff]
    %v112 = vld [vmem:[#allocation2 + $0x1f8] sm:$0xff]
    %v113 = vld [vmem:[#allocation2 + $0x200] sm:$0xff]
    %v114 = vld [vmem:[#allocation2 + $0x208] sm:$0xff]
    %v115 = vld [vmem:[#allocation2 + $0x210] sm:$0xff]
    %v116 = vld [vmem:[#allocation2 + $0x218] sm:$0xff]
    %v117 = vld [vmem:[#allocation2 + $0x220] sm:$0xff]
    %v118 = vld [vmem:[#allocation2 + $0x228] sm:$0xff]
    %v119 = vld [vmem:[#allocation2 + $0x230] sm:$0xff]
    %v120 = vld [vmem:[#allocation2 + $0x238] sm:$0xff]
    %v121 = vld [vmem:[#allocation2 + $0x240] sm:$0xff]
    %v122 = vld [vmem:[#allocation2 + $0x248] sm:$0xff]
    %v123 = vld [vmem:[#allocation2 + $0x250] sm:$0xff]
    %v124 = vld [vmem:[#allocation2 + $0x258] sm:$0xff]
    %v125 = vld [vmem:[#allocation2 + $0x260] sm:$0xff]
    %v126 = vld [vmem:[#allocation2 + $0x268] sm:$0xff]
    %v127 = vld [vmem:[#allocation2 + $0x270] sm:$0xff]
    %v128 = vld [vmem:[#allocation2 + $0x278] sm:$0xff]
    %v129 = vld [vmem:[#allocation2 + $0x280] sm:$0xff]
    %v130 = vld [vmem:[#allocation2 + $0x288] sm:$0xff]
    %v131 = vld [vmem:[#allocation2 + $0x290] sm:$0xff]
    %v132 = vld [vmem:[#allocation2 + $0x298] sm:$0xff]
    %v133 = vld [vmem:[#allocation2 + $0x2a0] sm:$0xff]
    %v134 = vld [vmem:[#allocation2 + $0x2a8] sm:$0xff]
    %v135 = vld [vmem:[#allocation2 + $0x2b0] sm:$0xff]
    %v136 = vld [vmem:[#allocation2 + $0x2b8] sm:$0xff]
    %v137 = vld [vmem:[#allocation2 + $0x2c0] sm:$0xff]
    %v138 = vld [vmem:[#allocation2 + $0x2c8] sm:$0xff]
    %v139 = vld [vmem:[#allocation2 + $0x2d0] sm:$0xff]
    %v140 = vld [vmem:[#allocation2 + $0x2d8] sm:$0xff]
    %v141 = vld [vmem:[#allocation2 + $0x2e0] sm:$0xff]
    %v142 = vld [vmem:[#allocation2 + $0x2e8] sm:$0xff]
    %v143 = vld [vmem:[#allocation2 + $0x2f0] sm:$0xff]
    %v144 = vld [vmem:[#allocation2 + $0x2f8] sm:$0xff]
    %v145 = vld [vmem:[#allocation2 + $0x300] sm:$0xff]
    %v146 = vld [vmem:[#allocation2 + $0x308] sm:$0xff]
    %v147 = vld [vmem:[#allocation2 + $0x310] sm:$0xff]
    %v148 = vld [vmem:[#allocation2 + $0x318] sm:$0xff]
    %v149 = vld [vmem:[#allocation2 + $0x320] sm:$0xff]
    %v150 = vld [vmem:[#allocation2 + $0x328] sm:$0xff]
    %v151 = vld [vmem:[#allocation2 + $0x330] sm:$0xff]
    %v152 = vld [vmem:[#allocation2 + $0x338] sm:$0xff]
    %v153 = vld [vmem:[#allocation2 + $0x340] sm:$0xff]
    %v154 = vld [vmem:[#allocation2 + $0x348] sm:$0xff]
    %v155 = vld [vmem:[#allocation2 + $0x350] sm:$0xff]
    %v156 = vld [vmem:[#allocation2 + $0x358] sm:$0xff]
    %v157 = vld [vmem:[#allocation2 + $0x360] sm:$0xff]
    %v158 = vld [vmem:[#allocation2 + $0x368] sm:$0xff]
    %v159 = vld [vmem:[#allocation2 + $0x370] sm:$0xff]
    %v160 = vld [vmem:[#allocation2 + $0x378] sm:$0xff]
    %v161 = vld [vmem:[#allocation2 + $0x380] sm:$0xff]
    %v162 = vld [vmem:[#allocation2 + $0x388] sm:$0xff]
    %v163 = vld [vmem:[#allocation2 + $0x390] sm:$0xff]
    %v164 = vld [vmem:[#allocation2 + $0x398] sm:$0xff]
    %v165 = vld [vmem:[#allocation2 + $0x3a0] sm:$0xff]
    %v166 = vld [vmem:[#allocation2 + $0x3a8] sm:$0xff]
    %v167 = vld [vmem:[#allocation2 + $0x3b0] sm:$0xff]
    %v168 = vld [vmem:[#allocation2 + $0x3b8] sm:$0xff]
    %v169 = vld [vmem:[#allocation2 + $0x3c0] sm:$0xff]
    %v170 = vld [vmem:[#allocation2 + $0x3c8] sm:$0xff]
    %v171 = vld [vmem:[#allocation2 + $0x3d0] sm:$0xff]
    %v172 = vld [vmem:[#allocation2 + $0x3d8] sm:$0xff]
    %v173 = vld [vmem:[#allocation2 + $0x3e0] sm:$0xff]
    %v174 = vld [vmem:[#allocation2 + $0x3e8] sm:$0xff]
    %v175 = vld [vmem:[#allocation2 + $0x3f0] sm:$0xff]
    %v176 = vld [vmem:[#allocation2 + $0x3f8] sm:$0xff]
    %177 = vmatprep.subr.mxu0 0.0
    %178 = vmatpush1.msra.mxu0 %v49
    %179 = vmatprep.subr.mxu0 0.0
    %180 = vmatpush1.msra.mxu0 %v50
    %181 = vmatprep.subr.mxu0 0.0
    %182 = vmatpush1.msra.mxu0 %v51
    %183 = vmatprep.subr.mxu0 0.0
    %184 = vmatpush1.msra.mxu0 %v52
    %185 = vmatprep.subr.mxu0 0.0
    %186 = vmatpush1.msra.mxu0 %v53
    %187 = vmatprep.subr.mxu0 0.0
    %188 = vmatpush1.msra.mxu0 %v54
    %189 = vmatprep.subr.mxu0 0.0
    %190 = vmatpush1.msra.mxu0 %v55
    %191 = vmatprep.subr.mxu0 0.0
    %192 = vmatpush1.msra.mxu0 %v56
    %193 = vmatprep.subr.mxu0 0.0
    %194 = vmatpush1.msra.mxu0 %v57
    %195 = vmatprep.subr.mxu0 0.0
    %196 = vmatpush1.msra.mxu0 %v58
    %197 = vmatprep.subr.mxu0 0.0
    %198 = vmatpush1.msra.mxu0 %v59
    %199 = vmatprep.subr.mxu0 0.0
    %200 = vmatpush1.msra.mxu0 %v60
    %201 = vmatprep.subr.mxu0 0.0
    %202 = vmatpush1.msra.mxu0 %v61
    %203 = vmatprep.subr.mxu0 0.0
    %204 = vmatpush1.msra.mxu0 %v62
    %205 = vmatprep.subr.mxu0 0.0
    %206 = vmatpush1.msra.mxu0 %v63
    %207 = vmatprep.subr.mxu0 0.0
    %208 = vmatpush1.msra.mxu0 %v64
    %209 = vmatprep.subr.mxu0 0.0
    %210 = vmatpush1.msra.mxu0 %v65
    %211 = vmatprep.subr.mxu0 0.0
    %212 = vmatpush1.msra.mxu0 %v66
    %213 = vmatprep.subr.mxu0 0.0
    %214 = vmatpush1.msra.mxu0 %v67
    %215 = vmatprep.subr.mxu0 0.0
    %216 = vmatpush1.msra.mxu0 %v68
    %217 = vmatprep.subr.mxu0 0.0
    %218 = vmatpush1.msra.mxu0 %v69
    %219 = vmatprep.subr.mxu0 0.0
    %220 = vmatpush1.msra.mxu0 %v70
    %221 = vmatprep.subr.mxu0 0.0
    %222 = vmatpush1.msra.mxu0 %v71
    %223 = vmatprep.subr.mxu0 0.0
    %224 = vmatpush1.msra.mxu0 %v72
    %225 = vmatprep.subr.mxu0 0.0
    %226 = vmatpush1.msra.mxu0 %v73
    %227 = vmatprep.subr.mxu0 0.0
    %228 = vmatpush1.msra.mxu0 %v74
    %229 = vmatprep.subr.mxu0 0.0
    %230 = vmatpush1.msra.mxu0 %v75
    %231 = vmatprep.subr.mxu0 0.0
    %232 = vmatpush1.msra.mxu0 %v76
    %233 = vmatprep.subr.mxu0 0.0
    %234 = vmatpush1.msra.mxu0 %v77
    %235 = vmatprep.subr.mxu0 0.0
    %236 = vmatpush1.msra.mxu0 %v78
    %237 = vmatprep.subr.mxu0 0.0
    %238 = vmatpush1.msra.mxu0 %v79
    %239 = vmatprep.subr.mxu0 0.0
    %240 = vmatpush1.msra.mxu0 %v80
    %241 = vmatprep.mubr.f32.mxu0 %v42
    %242 = vmatmul.mubr.f32.gmra.mrb[0].mxu0 %v41
    %v243 = vpop.f32.mrb[0].mxu0
    %v244 = vadd.f32 0.0, %v243
    %v245 = vpop.f32.mrb[0].mxu0
    %246 = vdwg.mxu0
    %247 = vmatprep.subr.mxu0 0.0
    %248 = vmatpush1.msra.mxu0 %v81
    %249 = vmatprep.subr.mxu0 0.0
    %250 = vmatpush1.msra.mxu0 %v82
    %251 = vmatprep.subr.mxu0 0.0
    %252 = vmatpush1.msra.mxu0 %v83
    %253 = vmatprep.subr.mxu0 0.0
    %254 = vmatpush1.msra.mxu0 %v84
    %255 = vmatprep.subr.mxu0 0.0
    %256 = vmatpush1.msra.mxu0 %v85
    %257 = vmatprep.subr.mxu0 0.0
    %258 = vmatpush1.msra.mxu0 %v86
    %259 = vmatprep.subr.mxu0 0.0
    %260 = vmatpush1.msra.mxu0 %v87
    %261 = vmatprep.subr.mxu0 0.0
    %262 = vmatpush1.msra.mxu0 %v88
    %263 = vmatprep.subr.mxu0 0.0
    %264 = vmatpush1.msra.mxu0 %v89
    %265 = vmatprep.subr.mxu0 0.0
    %266 = vmatpush1.msra.mxu0 %v90
    %267 = vmatprep.subr.mxu0 0.0
    %268 = vmatpush1.msra.mxu0 %v91
    %269 = vmatprep.subr.mxu0 0.0
    %270 = vmatpush1.msra.mxu0 %v92
    %271 = vmatprep.subr.mxu0 0.0
    %272 = vmatpush1.msra.mxu0 %v93
    %273 = vmatprep.subr.mxu0 0.0
    %274 = vmatpush1.msra.mxu0 %v94
    %275 = vmatprep.subr.mxu0 0.0
    %276 = vmatpush1.msra.mxu0 %v95
    %277 = vmatprep.subr.mxu0 0.0
    %278 = vmatpush1.msra.mxu0 %v96
    %279 = vmatprep.subr.mxu0 0.0
    %280 = vmatpush1.msra.mxu0 %v97
    %281 = vmatprep.subr.mxu0 0.0
    %282 = vmatpush1.msra.mxu0 %v98
    %283 = vmatprep.subr.mxu0 0.0
    %284 = vmatpush1.msra.mxu0 %v99
    %285 = vmatprep.subr.mxu0 0.0
    %286 = vmatpush1.msra.mxu0 %v100
    %287 = vmatprep.subr.mxu0 0.0
    %288 = vmatpush1.msra.mxu0 %v101
    %289 = vmatprep.subr.mxu0 0.0
    %290 = vmatpush1.msra.mxu0 %v102
    %291 = vmatprep.subr.mxu0 0.0
    %292 = vmatpush1.msra.mxu0 %v103
    %293 = vmatprep.subr.mxu0 0.0
    %294 = vmatpush1.msra.mxu0 %v104
    %295 = vmatprep.subr.mxu0 0.0
    %296 = vmatpush1.msra.mxu0 %v105
    %297 = vmatprep.subr.mxu0 0.0
    %298 = vmatpush1.msra.mxu0 %v106
    %299 = vmatprep.subr.mxu0 0.0
    %300 = vmatpush1.msra.mxu0 %v107
    %301 = vmatprep.subr.mxu0 0.0
    %302 = vmatpush1.msra.mxu0 %v108
    %303 = vmatprep.subr.mxu0 0.0
    %304 = vmatpush1.msra.mxu0 %v109
    %305 = vmatprep.subr.mxu0 0.0
    %306 = vmatpush1.msra.mxu0 %v110
    %307 = vmatprep.subr.mxu0 0.0
    %308 = vmatpush1.msra.mxu0 %v111
    %309 = vmatprep.subr.mxu0 0.0
    %310 = vmatpush1.msra.mxu0 %v112
    %311 = vmatprep.mubr.f32.mxu0 %v44
    %312 = vmatmul.mubr.f32.gmra.mrb[0].mxu0 %v43
    %v313 = vpop.f32.mrb[0].mxu0
    %v314 = vadd.f32 %v244, %v313
    %v315 = vpop.f32.mrb[0].mxu0
    %316 = vdwg.mxu0
    %317 = vmatprep.subr.mxu0 0.0
    %318 = vmatpush1.msra.mxu0 %v113
    %319 = vmatprep.subr.mxu0 0.0
    %320 = vmatpush1.msra.mxu0 %v114
    %321 = vmatprep.subr.mxu0 0.0
    %322 = vmatpush1.msra.mxu0 %v115
    %323 = vmatprep.subr.mxu0 0.0
    %324 = vmatpush1.msra.mxu0 %v116
    %325 = vmatprep.subr.mxu0 0.0
    %326 = vmatpush1.msra.mxu0 %v117
    %327 = vmatprep.subr.mxu0 0.0
    %328 = vmatpush1.msra.mxu0 %v118
    %329 = vmatprep.subr.mxu0 0.0
    %330 = vmatpush1.msra.mxu0 %v119
    %331 = vmatprep.subr.mxu0 0.0
    %332 = vmatpush1.msra.mxu0 %v120
    %333 = vmatprep.subr.mxu0 0.0
    %334 = vmatpush1.msra.mxu0 %v121
    %335 = vmatprep.subr.mxu0 0.0
    %336 = vmatpush1.msra.mxu0 %v122
    %337 = vmatprep.subr.mxu0 0.0
    %338 = vmatpush1.msra.mxu0 %v123
    %339 = vmatprep.subr.mxu0 0.0
    %340 = vmatpush1.msra.mxu0 %v124
    %341 = vmatprep.subr.mxu0 0.0
    %342 = vmatpush1.msra.mxu0 %v125
    %343 = vmatprep.subr.mxu0 0.0
    %344 = vmatpush1.msra.mxu0 %v126
    %345 = vmatprep.subr.mxu0 0.0
    %346 = vmatpush1.msra.mxu0 %v127
    %347 = vmatprep.subr.mxu0 0.0
    %348 = vmatpush1.msra.mxu0 %v128
    %349 = vmatprep.subr.mxu0 0.0
    %350 = vmatpush1.msra.mxu0 %v129
    %351 = vmatprep.subr.mxu0 0.0
    %352 = vmatpush1.msra.mxu0 %v130
    %353 = vmatprep.subr.mxu0 0.0
    %354 = vmatpush1.msra.mxu0 %v131
    %355 = vmatprep.subr.mxu0 0.0
    %356 = vmatpush1.msra.mxu0 %v132
    %357 = vmatprep.subr.mxu0 0.0
    %358 = vmatpush1.msra.mxu0 %v133
    %359 = vmatprep.subr.mxu0 0.0
    %360 = vmatpush1.msra.mxu0 %v134
    %361 = vmatprep.subr.mxu0 0.0
    %362 = vmatpush1.msra.mxu0 %v135
    %363 = vmatprep.subr.mxu0 0.0
    %364 = vmatpush1.msra.mxu0 %v136
    %365 = vmatprep.subr.mxu0 0.0
    %366 = vmatpush1.msra.mxu0 %v137
    %367 = vmatprep.subr.mxu0 0.0
    %368 = vmatpush1.msra.mxu0 %v138
    %369 = vmatprep.subr.mxu0 0.0
    %370 = vmatpush1.msra.mxu0 %v139
    %371 = vmatprep.subr.mxu0 0.0
    %372 = vmatpush1.msra.mxu0 %v140
    %373 = vmatprep.subr.mxu0 0.0
    %374 = vmatpush1.msra.mxu0 %v141
    %375 = vmatprep.subr.mxu0 0.0
    %376 = vmatpush1.msra.mxu0 %v142
    %377 = vmatprep.subr.mxu0 0.0
    %378 = vmatpush1.msra.mxu0 %v143
    %379 = vmatprep.subr.mxu0 0.0
    %380 = vmatpush1.msra.mxu0 %v144
    %381 = vmatprep.mubr.f32.mxu0 %v46
    %382 = vmatmul.mubr.f32.gmra.mrb[0].mxu0 %v45
    %v383 = vpop.f32.mrb[0].mxu0
    %v384 = vadd.f32 %v314, %v383
    %v385 = vpop.f32.mrb[0].mxu0
    %386 = vdwg.mxu0
    %387 = vmatprep.subr.mxu0 0.0
    %388 = vmatpush1.msra.mxu0 %v145
    %389 = vmatprep.subr.mxu0 0.0
    %390 = vmatpush1.msra.mxu0 %v146
    %391 = vmatprep.subr.mxu0 0.0
    %392 = vmatpush1.msra.mxu0 %v147
    %393 = vmatprep.subr.mxu0 0.0
    %394 = vmatpush1.msra.mxu0 %v148
    %395 = vmatprep.subr.mxu0 0.0
    %396 = vmatpush1.msra.mxu0 %v149
    %397 = vmatprep.subr.mxu0 0.0
    %398 = vmatpush1.msra.mxu0 %v150
    %399 = vmatprep.subr.mxu0 0.0
    %400 = vmatpush1.msra.mxu0 %v151
    %401 = vmatprep.subr.mxu0 0.0
    %402 = vmatpush1.msra.mxu0 %v152
    %403 = vmatprep.subr.mxu0 0.0
    %404 = vmatpush1.msra.mxu0 %v153
    %405 = vmatprep.subr.mxu0 0.0
    %406 = vmatpush1.msra.mxu0 %v154
    %407 = vmatprep.subr.mxu0 0.0
    %408 = vmatpush1.msra.mxu0 %v155
    %409 = vmatprep.subr.mxu0 0.0
    %410 = vmatpush1.msra.mxu0 %v156
    %411 = vmatprep.subr.mxu0 0.0
    %412 = vmatpush1.msra.mxu0 %v157
    %413 = vmatprep.subr.mxu0 0.0
    %414 = vmatpush1.msra.mxu0 %v158
    %415 = vmatprep.subr.mxu0 0.0
    %416 = vmatpush1.msra.mxu0 %v159
    %417 = vmatprep.subr.mxu0 0.0
    %418 = vmatpush1.msra.mxu0 %v160
    %419 = vmatprep.subr.mxu0 0.0
    %420 = vmatpush1.msra.mxu0 %v161
    %421 = vmatprep.subr.mxu0 0.0
    %422 = vmatpush1.msra.mxu0 %v162
    %423 = vmatprep.subr.mxu0 0.0
    %424 = vmatpush1.msra.mxu0 %v163
    %425 = vmatprep.subr.mxu0 0.0
    %426 = vmatpush1.msra.mxu0 %v164
    %427 = vmatprep.subr.mxu0 0.0
    %428 = vmatpush1.msra.mxu0 %v165
    %429 = vmatprep.subr.mxu0 0.0
    %430 = vmatpush1.msra.mxu0 %v166
    %431 = vmatprep.subr.mxu0 0.0
    %432 = vmatpush1.msra.mxu0 %v167
    %433 = vmatprep.subr.mxu0 0.0
    %434 = vmatpush1.msra.mxu0 %v168
    %435 = vmatprep.subr.mxu0 0.0
    %436 = vmatpush1.msra.mxu0 %v169
    %437 = vmatprep.subr.mxu0 0.0
    %438 = vmatpush1.msra.mxu0 %v170
    %439 = vmatprep.subr.mxu0 0.0
    %440 = vmatpush1.msra.mxu0 %v171
    %441 = vmatprep.subr.mxu0 0.0
    %442 = vmatpush1.msra.mxu0 %v172
    %443 = vmatprep.subr.mxu0 0.0
    %444 = vmatpush1.msra.mxu0 %v173
    %445 = vmatprep.subr.mxu0 0.0
    %446 = vmatpush1.msra.mxu0 %v174
    %447 = vmatprep.subr.mxu0 0.0
    %448 = vmatpush1.msra.mxu0 %v175
    %449 = vmatprep.subr.mxu0 0.0
    %450 = vmatpush1.msra.mxu0 %v176
    %451 = vmatprep.mubr.f32.mxu0 %v48
    %452 = vmatmul.mubr.f32.gmra.mrb[0].mxu0 %v47
    %v453 = vpop.f32.mrb[0].mxu0
    %v454 = vadd.f32 %v384, %v453
    %v455 = vpop.f32.mrb[0].mxu0
    %456 = vdwg.mxu0
    %v457 = vadd.f32 %v40, %v454
    %458 = vst [vmem:[%s3] sm:$0xff] %v457
    // Predicated region
    $region22: #{tree_module_forward.1} parent=1 // pred_check
      _
    $region23: #{tree_module_forward.1} parent=1 // pred_check_branch
      %460 = sbr.rel (0) target = $region25
    $region24: #{tree_module_forward.1} parent=1 // pred_region
      _
    $region25: #{tree_module_forward.1} parent=1 // pred_fallthru
      _
    // Predicated region
    $region26: #{tree_module_forward.1} parent=1 // pred_check
      _
    $region27: #{tree_module_forward.1} parent=1 // pred_check_branch
      %462 = sbr.rel (0) target = $region29
    $region28: #{tree_module_forward.1} parent=1 // pred_region
      _
    $region29: #{tree_module_forward.1} parent=1 // pred_fallthru
      _
    %463 = vsyncpa [#allocation3], 1

</llo_original>
